<compile_context>
chip_gen: v7x
topology: tpu7x:2x2x1
jax: 0.10.0
libtpu: 0.0.40
codegen_flags: <defaults>
</compile_context>

<pallas_src>
import jax
import jax.numpy as jnp
from jax.experimental import pallas as pl
from jax.experimental.pallas import tpu as pltpu


def _round_up(x, m):
    return ((x + m - 1) // m) * m


def _pick_tb(B):
    """Batch tile: multiple of 8, large (<=512), >=2 grid steps when B allows."""
    if B <= 8:
        return 8
    half = -(-B // 2)                      # ceil(B/2) -> at least 2 grid steps
    return min(512, _round_up(half, 8))


# --------------------------------------------------------------------------------------
# Pallas kernel: classification head = CLS-hidden @ W^T + b  (pure matmul + bias)
# --------------------------------------------------------------------------------------
def classification_head_kernel(cls_ref, w_ref, b_ref, out_ref):
    # cls_ref: [TB, E]      bf16   (CLS hidden states for this batch tile, mask already applied)
    # w_ref:   [E, N_pad]   bf16   (fc weight, pre-transposed + lane-padded; resident)
    # b_ref:   [1, N_pad]   f32    (fc bias, lane-padded; resident)
    # out_ref: [TB, N_pad]  f32
    logits = jnp.dot(cls_ref[...], w_ref[...], preferred_element_type=jnp.float32)
    out_ref[...] = (logits + b_ref[...]).astype(out_ref.dtype)


# --------------------------------------------------------------------------------------
# One-time parameter preparation (hoisted off the per-forward critical path)
# --------------------------------------------------------------------------------------
def prepare_fc_params(fc_w, fc_b):
    """fc_w: [n_labels, E], fc_b: [n_labels]  ->  params dict for the forward."""
    n_labels, E = fc_w.shape
    N_pad = _round_up(n_labels, 128)
    w_t = jnp.zeros((E, N_pad), jnp.bfloat16).at[:, :n_labels].set(
        fc_w.T.astype(jnp.bfloat16))                       # [E, N_pad]  (zero cols beyond n_labels)
    b_pad = jnp.zeros((1, N_pad), jnp.float32).at[0, :n_labels].set(
        fc_b.astype(jnp.float32))                          # [1, N_pad]
    return {
        "w_t": w_t, "b_pad": b_pad,
        "fc_w": fc_w.astype(jnp.float32), "fc_b": fc_b.astype(jnp.float32),
        "n_labels": n_labels,
    }


# --------------------------------------------------------------------------------------
# Forward
# --------------------------------------------------------------------------------------
def classification_model_forward(input_ids, embedding_table, params, *, force_pallas=False):
    """input_ids: [B, S] int32; returns logits [B, n_labels] f32."""
    B, S = input_ids.shape
    E = embedding_table.shape[1]
    n_labels = params["n_labels"]
    N_pad = params["w_t"].shape[1]

    # ---- encoder stand-in (glue, plain JAX): only the CLS row is needed downstream ----
    cls_ids = input_ids[:, 0].astype(jnp.int32)                          # [B]
    cls_hidden = jnp.take(embedding_table, cls_ids, axis=0).astype(jnp.float32)  # [B, E]

    # Mask penalty folded into the wrapper (fuses with the gather).  Only the CLS row
    # reaches the output, so applying it here is identical to the original order.
    mask = (cls_ids != 0).astype(jnp.float32)[:, None]                   # [B, 1]
    cls_hidden = cls_hidden - jnp.float32(1e-12) * (1.0 - mask)

    # ---- tiny-batch path: dispatch/padding overhead dwarfs the matmul; let XLA fuse it ----
    if B < 64 and not force_pallas:
        return cls_hidden @ params["fc_w"].T + params["fc_b"]            # [B, n_labels] f32

    # ---- Pallas path (large batch): bf16 activations, batch-tiled "parallel" grid ----
    cls_bf16 = cls_hidden.astype(jnp.bfloat16)                           # [B, E]
    TB = _pick_tb(B)
    B_pad = _round_up(B, TB)
    if B_pad != B:
        # Padded rows are all-zero hidden states -> logits = bias; sliced off below.
        cls_bf16 = jnp.zeros((B_pad, E), jnp.bfloat16).at[:B].set(cls_bf16)

    grid = (B_pad // TB,)

    out_pad = pl.pallas_call(
        classification_head_kernel,
        out_shape=jax.ShapeDtypeStruct((B_pad, N_pad), jnp.float32),
        grid=grid,
        in_specs=[
            # E is the full array extent -> legal block even when E is not a multiple of 128.
            pl.BlockSpec((TB, E), lambda i: (i, 0)),          # CLS hidden per batch tile
            pl.BlockSpec((E, N_pad), lambda i: (0, 0)),       # weight (resident across grid)
            pl.BlockSpec((1, N_pad), lambda i: (0, 0)),       # bias   (resident across grid)
        ],
        out_specs=pl.BlockSpec((TB, N_pad), lambda i: (i, 0)),
        compiler_params=pltpu.CompilerParams(
            dimension_semantics=("parallel",),
        ),
    )(cls_bf16, params["w_t"], params["b_pad"])

    return out_pad[:B, :n_labels]


# --------------------------------------------------------------------------------------
# Pure-JAX reference of the original full-sequence semantics (f32 throughout)
# --------------------------------------------------------------------------------------
def _reference_forward(input_ids, embedding_table, fc_w, fc_b):
    hidden = jnp.take(embedding_table, input_ids, axis=0)                # [B, S, E]
    mask = (input_ids != 0).astype(jnp.float32)[:, :, None]
    hidden = hidden - 1e-12 * (1.0 - mask)
    return hidden[:, 0] @ fc_w.T + fc_b                                  # [B, n_labels]


if __name__ == "__main__":
    # Small shapes consistent with the module's forward.
    B, S, E = 2, 8, 32          # batch, seq_len, config.embedding_size
    n_labels = 6
    vocab = 50

    key = jax.random.PRNGKey(0)
    k_ids, k_emb, k_w, k_b, k_ids2 = jax.random.split(key, 5)

    # input_ids with some zeros (padding) so the mask path is exercised.
    input_ids = jax.random.randint(k_ids, (B, S), minval=0, maxval=vocab, dtype=jnp.int32)
    input_ids = input_ids.at[:, S - 2:].set(0)          # force some padding tokens

    # Deterministic parameters (synthetic, not loaded from checkpoint).
    embedding_table = jax.random.normal(k_emb, (vocab, E), dtype=jnp.float32) * 0.02
    fc_w = jax.random.normal(k_w, (n_labels, E), dtype=jnp.float32) * 0.02
    fc_b = jax.random.normal(k_b, (n_labels,), dtype=jnp.float32) * 0.02

    params = prepare_fc_params(fc_w, fc_b)              # one-time, off the forward path

    # --- 1) tiny-batch fallback path (plain XLA, f32) ---
    logits_small = classification_model_forward(input_ids, embedding_table, params)
    jax.block_until_ready(logits_small)
    ref_small = _reference_forward(input_ids, embedding_table, fc_w, fc_b)
    assert logits_small.shape == (B, n_labels)
    assert jnp.allclose(logits_small, ref_small, atol=1e-5, rtol=1e-5)

    # --- 2) Pallas kernel path, forced at the small test batch (grid=1) ---
    logits_k = classification_model_forward(input_ids, embedding_table, params,
                                            force_pallas=True)
    jax.block_until_ready(logits_k)
    assert logits_k.shape == (B, n_labels)
    # bf16 MXU inputs -> relaxed tolerance vs. the f32 reference.
    assert jnp.allclose(logits_k, ref_small, atol=1e-3, rtol=1e-2)

    # --- 3) Pallas kernel path with a multi-step grid (B=144 -> TB=72, grid=2) ---
    B2 = 144
    input_ids2 = jax.random.randint(k_ids2, (B2, S), minval=0, maxval=vocab, dtype=jnp.int32)
    input_ids2 = input_ids2.at[:B2 // 3, 0].set(0)      # some CLS ids == 0 to exercise the mask
    logits2 = classification_model_forward(input_ids2, embedding_table, params)
    jax.block_until_ready(logits2)
    ref2 = _reference_forward(input_ids2, embedding_table, fc_w, fc_b)
    assert logits2.shape == (B2, n_labels)
    assert jnp.allclose(logits2, ref2, atol=1e-3, rtol=1e-2)

    print("KERNEL_OK")
</pallas_src>

<mosaic_0001>
module attributes {stable_mosaic.version = 11 : i64} {
  func.func @classification_head_kernel(%arg0: i32, %arg1: memref<8x32xbf16, #tpu.memory_space<vmem>>, %arg2: memref<32x128xbf16, #tpu.memory_space<vmem>>, %arg3: memref<1x128xf32, #tpu.memory_space<vmem>>, %arg4: memref<8x128xf32, #tpu.memory_space<vmem>>) attributes {dimension_semantics = [#tpu.dimension_semantics<parallel>], iteration_bounds = array<i64: 1>, scalar_prefetch = 0 : i64, scratch_operands = 0 : i64, tpu.core_type = #tpu.core_type<tc>, window_params = [{transform_indices = @transform_0, window_bounds = array<i64: 8, 32>}, {pipeline_mode = #tpu.pipeline_mode<synchronous>, transform_indices = @transform_1, window_bounds = array<i64: 32, 128>}, {pipeline_mode = #tpu.pipeline_mode<synchronous>, transform_indices = @transform_2, window_bounds = array<i64: 1, 128>}, {transform_indices = @transform_3, window_bounds = array<i64: 8, 128>}]} {
    %c0 = arith.constant 0 : index
    %c0_0 = arith.constant 0 : index
    %0 = vector.load %arg1[%c0, %c0_0] : memref<8x32xbf16, #tpu.memory_space<vmem>>, vector<8x32xbf16>
    %c0_1 = arith.constant 0 : index
    %c0_2 = arith.constant 0 : index
    %1 = vector.load %arg2[%c0_1, %c0_2] : memref<32x128xbf16, #tpu.memory_space<vmem>>, vector<32x128xbf16>
    %cst = arith.constant dense<0.000000e+00> : vector<8x128xf32>
    %2 = tpu.matmul %0, %1, %cst {dimension_numbers = #tpu.dot_dimension_numbers<[1], [0], [0], [1], [0, 0, 1, 1], [], []>} : vector<8x32xbf16>, vector<32x128xbf16>, vector<8x128xf32> -> vector<8x128xf32>
    %c0_3 = arith.constant 0 : index
    %c0_4 = arith.constant 0 : index
    %3 = vector.load %arg3[%c0_3, %c0_4] : memref<1x128xf32, #tpu.memory_space<vmem>>, vector<1x128xf32>
    %4 = vector.broadcast %3 : vector<1x128xf32> to vector<8x128xf32>
    %5 = arith.addf %2, %4 : vector<8x128xf32>
    %c0_5 = arith.constant 0 : index
    %c0_6 = arith.constant 0 : index
    %6 = vector.load %arg4[%c0_5, %c0_6] : memref<8x128xf32, #tpu.memory_space<vmem>>, vector<8x128xf32>
    tpu.vector_store %arg4[%c0_5, %c0_6], %5 {strides = array<i32>} : memref<8x128xf32, #tpu.memory_space<vmem>>, vector<8x128xf32>,
    return
  }
  func.func @transform_0(%arg0: i32) -> (i32, i32) {
    %c0_i32 = arith.constant 0 : i32
    %c0_i32_0 = arith.constant 0 : i32
    return %arg0, %c0_i32 : i32, i32
  }
  func.func @transform_1(%arg0: i32) -> (i32, i32) {
    %c0_i32 = arith.constant 0 : i32
    %c0_i32_0 = arith.constant 0 : i32
    %c0_i32_1 = arith.constant 0 : i32
    return %c0_i32, %c0_i32_0 : i32, i32
  }
  func.func @transform_2(%arg0: i32) -> (i32, i32) {
    %c0_i32 = arith.constant 0 : i32
    %c0_i32_0 = arith.constant 0 : i32
    %c0_i32_1 = arith.constant 0 : i32
    return %c0_i32, %c0_i32_0 : i32, i32
  }
  func.func @transform_3(%arg0: i32) -> (i32, i32) {
    %c0_i32 = arith.constant 0 : i32
    %c0_i32_0 = arith.constant 0 : i32
    return %arg0, %c0_i32 : i32, i32
  }
}

</mosaic_0001>

<llo_original>
// kernel: tpu_custom_call.1
$region0: #{tpu_custom_call.1}
  #allocation0 [shape = 'u32[]', space=smem, size = 0x4, offset = 0x4, fixed_abs, tag = 'smem constant byte address 0x4 - core index']
  #allocation1 [shape = 'u32[144,128]{1,0:T(1,128)}', space=vmem, size = 0x12000, scoped, tag = 'internal scratch']
  %s0 = inlined_call_operand.hbm [shape: bf16[8,32], index: 0, kind: input, shape index: {}]
  %s1 = inlined_call_operand.hbm [shape: bf16[32,128], index: 1, kind: input, shape index: {}]
  %s2 = inlined_call_operand.vmem [shape: f32[1,128], index: 2, kind: input, shape index: {}]
  %s3 = inlined_call_operand.hbm [shape: f32[8,128], index: 3, kind: output, shape index: {}]
  %s4 = sld [smem:[#allocation0]]
  $region30: #{tpu_custom_call.1} parent=0
    _
  %s6 = ssub.s32 1, %s4
  %s7 = scalar_select 0, %s6, %s4
  $region1: #{tpu_custom_call.1} parent=0
    #allocation2 [shape = 'u8[2048]{0}', space=vmem, size = 0x800, scoped, tag = 'input window, operand 0, single buffered']
    #allocation3 [shape = 's32[1]{0}', space=sflag, size = 0x4, scoped, tag = 'scoped memory for tpu_custom_call.1']
    #allocation4 [shape = 's32[1]{0}', space=sflag, size = 0x4, scoped, tag = 'scoped memory for tpu_custom_call.1']
    #allocation5 [shape = 'u8[8192]{0}', space=vmem, size = 0x2000, scoped, tag = 'input window, operand 1, single buffered']
    #allocation6 [shape = 's32[1]{0}', space=sflag, size = 0x4, scoped, tag = 'scoped memory for tpu_custom_call.1']
    #allocation7 [shape = 'u8[4096]{0}', space=vmem, size = 0x1000, scoped, tag = 'output window, operand 0, single buffered']
    %8 = vsyncpa [#allocation3], 0
    %9 = vsyncpa [#allocation6], 0
    %10 = vsyncpa [#allocation4], 0
    // Predicated region
    $region2: #{tpu_custom_call.1} parent=1 // pred_check
      _
    $region3: #{tpu_custom_call.1} parent=1 // pred_check_branch
      %12 = sbr.rel (0) target = $region5
    $region4: #{tpu_custom_call.1} parent=1 // pred_region
      %s14 = ssub.s32 64, 64
      %15 = vsyncadd [#allocation3], %s14
      %s17 = sshll.u32 [#allocation2], 4
      %s18 = int_to_ptr.vmem [resolvable:$true] %s17
      %20 = dma.hbm_to_vmem [thread:$0]  %s0, 64, %s18, [#allocation3]
    $region5: #{tpu_custom_call.1} parent=1 // pred_fallthru
      _
    // Predicated region
    $region6: #{tpu_custom_call.1} parent=1 // pred_check
      _
    $region7: #{tpu_custom_call.1} parent=1 // pred_check_branch
      %22 = sbr.rel (0) target = $region9
    $region8: #{tpu_custom_call.1} parent=1 // pred_region
      %s24 = ssub.s32 256, 256
      %25 = vsyncadd [#allocation6], %s24
      %s26 = sshll.u32 [#allocation5], 4
      %s27 = int_to_ptr.vmem [resolvable:$true] %s26
      %32 = dma.hbm_to_vmem [thread:$0]  %s1, 256, %s27, [#allocation6], 64, 64, 4
    $region9: #{tpu_custom_call.1} parent=1 // pred_fallthru
      _
    // Predicated region
    $region10: #{tpu_custom_call.1} parent=1 // pred_check
      _
    $region11: #{tpu_custom_call.1} parent=1 // pred_check_branch
      %34 = sbr.rel (0) target = $region13
    $region12: #{tpu_custom_call.1} parent=1 // pred_region
      _
    $region13: #{tpu_custom_call.1} parent=1 // pred_fallthru
      _
    // Predicated region
    $region14: #{tpu_custom_call.1} parent=1 // pred_check
      _
    $region15: #{tpu_custom_call.1} parent=1 // pred_check_branch
      %36 = sbr.rel (0) target = $region17
    $region16: #{tpu_custom_call.1} parent=1 // pred_region
      %37 = dma.done [#allocation3], 64
    $region17: #{tpu_custom_call.1} parent=1 // pred_fallthru
      _
    // Predicated region
    $region18: #{tpu_custom_call.1} parent=1 // pred_check
      _
    $region19: #{tpu_custom_call.1} parent=1 // pred_check_branch
      %39 = sbr.rel (0) target = $region21
    $region20: #{tpu_custom_call.1} parent=1 // pred_region
      %40 = dma.done [#allocation6], 256
    $region21: #{tpu_custom_call.1} parent=1 // pred_fallthru
      _
    %v42 = vld [vmem:[#allocation2] sm:$0xf]
    %v43 = vld [vmem:[#allocation5] sm:$0xf]
    %v44 = vld [vmem:[#allocation5 + $0x4] sm:$0xf]
    %v45 = vld [vmem:[#allocation5 + $0x8] sm:$0xf]
    %v46 = vld [vmem:[#allocation5 + $0xc] sm:$0xf]
    %v47 = vld [vmem:[%s2] sm:$0x1]
    %v49 = vlaneseq
    %v50 = vshrl.u32 %v49, 7
    %v51 = vsub.s32 0, %v50
    %v52 = vrot.slane %v47, %v51
    %v58 = vunpack.c.l.b16 %v43
    %v59 = vunpack.c.l.b16 %v44
    %v60 = vunpack.c.l.b16 %v45
    %v61 = vunpack.c.l.b16 %v46
    %v62 = vpack.c.b16 %v59, %v58
    %v63 = vpack.c.b16 %v61, %v60
    %vm66 = vcmask 261120
    %v68 = vsel %vm66, %v42, 0
    %70 = vmatprep.subr.bf16.mxu0 0
    %71 = vmatpush1.bf16.msra.mxu0 %v62
    %72 = vmatprep.subr.bf16.mxu0 0
    %73 = vmatpush1.bf16.msra.mxu0 %v63
    %74 = vmatprep.subr.bf16.mxu0 0
    %75 = vmatpush1.bf16.msra.mxu0 0
    %76 = vmatprep.subr.bf16.mxu0 0
    %77 = vmatpush1.bf16.msra.mxu0 0
    %78 = vmatprep.subr.bf16.mxu0 0
    %79 = vmatpush1.bf16.msra.mxu0 0
    %80 = vmatprep.subr.bf16.mxu0 0
    %81 = vmatpush1.bf16.msra.mxu0 0
    %82 = vmatprep.subr.bf16.mxu0 0
    %83 = vmatpush1.bf16.msra.mxu0 0
    %84 = vmatprep.subr.bf16.mxu0 0
    %85 = vmatpush1.bf16.msra.mxu0 0
    %86 = vmatprep.subr.bf16.mxu0 0
    %87 = vmatpush1.bf16.msra.mxu0 0
    %88 = vmatprep.subr.bf16.mxu0 0
    %89 = vmatpush1.bf16.msra.mxu0 0
    %90 = vmatprep.subr.bf16.mxu0 0
    %91 = vmatpush1.bf16.msra.mxu0 0
    %92 = vmatprep.subr.bf16.mxu0 0
    %93 = vmatpush1.bf16.msra.mxu0 0
    %94 = vmatprep.subr.bf16.mxu0 0
    %95 = vmatpush1.bf16.msra.mxu0 0
    %96 = vmatprep.subr.bf16.mxu0 0
    %97 = vmatpush1.bf16.msra.mxu0 0
    %98 = vmatprep.subr.bf16.mxu0 0
    %99 = vmatpush1.bf16.msra.mxu0 0
    %100 = vmatprep.subr.bf16.mxu0 0
    %101 = vmatpush1.bf16.msra.mxu0 0
    %102 = vmatprep.mubr.bf16.mxu0 0
    %103 = vmatmul.mubr.bf16.gmra.mrb[0].mxu0 %v68
    %v104 = vpop.f32.mrb[0].mxu0
    %v105 = vadd.f32 %v52, %v104
    %v106 = vpop.f32.mrb[0].mxu0
    %v107 = vpop.f32.mrb[0].mxu0
    %v108 = vpop.f32.mrb[0].mxu0
    %109 = vdwg.mxu0
    %110 = vst [vmem:[#allocation7] sm:$0xff] %v105
    // Predicated region
    $region22: #{tpu_custom_call.1} parent=1 // pred_check
      _
    $region23: #{tpu_custom_call.1} parent=1 // pred_check_branch
      %112 = sbr.rel (0) target = $region25
    $region24: #{tpu_custom_call.1} parent=1 // pred_region
      %s114 = ssub.s32 128, 128
      %115 = vsyncadd [#allocation4], %s114
      %s117 = sshll.u32 [#allocation7], 4
      %s118 = int_to_ptr.vmem [resolvable:$true] %s117
      %120 = dma.vmem_to_hbm [thread:$0]  %s118, 128, %s3, [#allocation4]
    $region25: #{tpu_custom_call.1} parent=1 // pred_fallthru
      _
    // Predicated region
    $region26: #{tpu_custom_call.1} parent=1 // pred_check
      _
    $region27: #{tpu_custom_call.1} parent=1 // pred_check_branch
      %122 = sbr.rel (0) target = $region29
    $region28: #{tpu_custom_call.1} parent=1 // pred_region
      %123 = dma.done [#allocation4], 128
    $region29: #{tpu_custom_call.1} parent=1 // pred_fallthru
      _
    %124 = vsyncpa [#allocation3], 1
    %125 = vsyncpa [#allocation6], 1
    %126 = vsyncpa [#allocation4], 1

</llo_original>
